<compile_context>
chip_gen: v5e
topology: v5e:2x2
jax: 0.10.0
libtpu: 0.0.40
codegen_flags: <defaults>
</compile_context>

<pallas_src>
import jax
import jax.numpy as jnp
from jax.experimental import pallas as pl
from jax.experimental.pallas import tpu as pltpu


def _round_up(x, m):
    return ((x + m - 1) // m) * m


def _critic_kernel(x_ref, w1_ref, b1_ref, w2_ref, b2_ref, w3_ref, b3_ref, out_ref):
    """Fused 3-layer MLP for one [tile_b, state_dim] batch tile.

    Layers 1 and 2 run on the MXU with f32 accumulation.  The final
    (fc2 -> 1) layer is expressed as w3_row[1, fc2] contracted against
    h2[tile, fc2] on its last dim (i.e. w3_row @ h2^T), which puts the per-row
    value directly along lanes as a [1, tile] result -- the store is then a
    single unmasked lane-dense row write and no sublane->lane relayout of a
    skinny [tile, 1] array is required.  Weight refs may be bf16 (v6e/v7x
    fast path): activations are cast to the weight dtype right before each
    MXU dot, accumulation stays f32, and bias-add / ReLU / the final
    contraction stay f32 (v5e has no bf16 VPU).
    """
    x = x_ref[...].astype(w1_ref.dtype)
    h1 = jnp.dot(x, w1_ref[...], preferred_element_type=jnp.float32) + b1_ref[...]
    h1 = jnp.maximum(h1, 0.0)

    h1 = h1.astype(w2_ref.dtype)
    h2 = jnp.dot(h1, w2_ref[...], preferred_element_type=jnp.float32) + b2_ref[...]
    h2 = jnp.maximum(h2, 0.0)

    # out[0, b] = sum_j w3[0, j] * h2[b, j] + b3   (lane-dense [1, tile] row)
    v = jax.lax.dot_general(
        w3_ref[...], h2,
        dimension_numbers=(((1,), (1,)), ((), ())),
        preferred_element_type=jnp.float32,
    )
    out_ref[...] = (v + b3_ref[...]).astype(out_ref.dtype)


def critic_forward(x, params, *, tile_b=1024, use_bf16=False):
    """Run the fused critic MLP.  x: [B, state_dim] -> [B, 1] f32.

    tile_b: batch rows per grid step, rounded up internally to a multiple of
      128 and capped at ceil(B/2) (128-aligned) when B >= 256 so the parallel
      batch axis always has >= 2 grid steps (both v7x TensorCores get work).
      Even tile=2048 keeps the VMEM working set ~4 MB, well under the scoped
      default on every generation including v7x's 64 MiB part.
    use_bf16: cast the two large weight matrices to bf16 (f32 accumulation) --
      ~2x MXU throughput on v6e/v7x.  x is deliberately NOT cast here; pass x
      already in bf16 from the producer to also halve the O(B) HBM read.
      Keep False on v5e / for exactness.

    Ragged batches are handled via Pallas boundary blocks (no jnp.pad copy of
    x): the last block's out-of-bounds rows read unspecified data, which can
    only produce garbage/NaN in output lanes that are sliced away below.
    """
    w1, b1, w2, b2, w3, b3 = params
    B, state_dim = x.shape
    fc1 = w1.shape[1]
    fc2 = w2.shape[1]

    # NOTE: with state_dim < 128 (e.g. 32) the first matmul's contraction is
    # lane-sparse; callers that are first-layer-bound at very large batch can
    # zero-pad state_dim (x columns and w1 rows) to 128 on the host.
    # TODO(synk): optional in-wrapper K-padding if the first layer ever dominates.

    # Final layer weight as a [1, fc2] lane row; bias as [1, 1].  Kept f32.
    w3_row = jnp.reshape(w3, (1, fc2)).astype(jnp.float32)
    b3_row = jnp.reshape(b3, (1, 1)).astype(jnp.float32)
    if use_bf16:
        w1 = w1.astype(jnp.bfloat16)
        w2 = w2.astype(jnp.bfloat16)
        # x is intentionally not cast here (see docstring).

    # Batch tiling: >=128 rows per grid step; >=2 grid steps when B >= 256.
    tile = _round_up(max(1, min(int(tile_b), B)), 128)
    if B >= 256:
        tile = min(tile, _round_up((B + 1) // 2, 128))
    n_tiles = pl.cdiv(B, tile)
    Bp = n_tiles * tile          # logical padded batch (no data is padded)
    grid = (n_tiles,)

    flops = 2 * Bp * (state_dim * fc1 + fc1 * fc2 + fc2)
    bytes_accessed = (
        B * state_dim * x.dtype.itemsize
        + w1.size * w1.dtype.itemsize
        + w2.size * w2.dtype.itemsize
        + (b1.size + b2.size + fc2 + 1) * 4
        + Bp * 4
    )

    out = pl.pallas_call(
        _critic_kernel,
        # Lane-dense output: one contiguous [1, Bp] row; each grid step writes
        # an unmasked [1, tile] slab.
        out_shape=jax.ShapeDtypeStruct((1, Bp), jnp.float32),
        grid_spec=pltpu.PrefetchScalarGridSpec(
            num_scalar_prefetch=0,
            grid=grid,
            in_specs=[
                # activations: tiled along batch (last block may be a Pallas
                # boundary block when B % tile != 0 -- safe, see docstring)
                pl.BlockSpec((tile, state_dim), lambda i: (i, 0)),
                # weights / biases: full arrays, constant index map -> DMA'd once
                pl.BlockSpec((state_dim, fc1), lambda i: (0, 0)),
                pl.BlockSpec((1, fc1), lambda i: (0, 0)),
                pl.BlockSpec((fc1, fc2), lambda i: (0, 0)),
                pl.BlockSpec((1, fc2), lambda i: (0, 0)),
                pl.BlockSpec((1, fc2), lambda i: (0, 0)),   # w3 as a lane row
                pl.BlockSpec((1, 1), lambda i: (0, 0)),
            ],
            out_specs=pl.BlockSpec((1, tile), lambda i: (0, i)),
        ),
        compiler_params=pltpu.CompilerParams(
            dimension_semantics=("parallel",),
        ),
        cost_estimate=pl.CostEstimate(
            flops=flops, transcendentals=0, bytes_accessed=bytes_accessed),
    )(x, w1, b1, w2, b2, w3_row, b3_row)

    # Slice off padded lanes (if any) and restore the [B, 1] column shape.
    return jnp.reshape(out[0, :B], (B, 1))


def init_critic_params(key, state_dim, fc1_dims=256, fc2_dims=128):
    """Deterministic synthetic init mirroring nn.Linear shapes.

    PyTorch stores weights as [out, in]; we keep them pre-transposed as
    [in, out] for the kernel.  Biases are stored as [1, out]."""
    ks = jax.random.split(key, 6)

    def uniform(k, shape, fan_in):
        bound = 1.0 / jnp.sqrt(fan_in)
        return jax.random.uniform(k, shape, jnp.float32, -bound, bound)

    w1 = uniform(ks[0], (state_dim, fc1_dims), state_dim)
    b1 = uniform(ks[1], (1, fc1_dims), state_dim)
    w2 = uniform(ks[2], (fc1_dims, fc2_dims), fc1_dims)
    b2 = uniform(ks[3], (1, fc2_dims), fc1_dims)
    w3 = uniform(ks[4], (fc2_dims, 1), fc2_dims)
    b3 = uniform(ks[5], (1, 1), fc2_dims)
    return (w1, b1, w2, b2, w3, b3)


def critic_forward_ref(x, params):
    w1, b1, w2, b2, w3, b3 = params
    h1 = jnp.maximum(x @ w1 + b1, 0.0)
    h2 = jnp.maximum(h1 @ w2 + b2, 0.0)
    return h2 @ w3 + b3


if __name__ == "__main__":
    key = jax.random.PRNGKey(0)
    k_x, k_p = jax.random.split(key)

    batch = 512          # tile capped to 256 -> 2 grid steps (both v7x TCs)
    state_dim = 32
    fc1_dims = 256
    fc2_dims = 128

    x = jax.random.normal(k_x, (batch, state_dim), jnp.float32)
    params = init_critic_params(k_p, state_dim, fc1_dims, fc2_dims)
    ref = critic_forward_ref(x, params)

    # f32 path (default), divisible batch
    value = critic_forward(x, params)
    jax.block_until_ready(value)
    assert value.shape == (batch, 1)
    assert jnp.allclose(value, ref, atol=1e-4, rtol=1e-4), "mismatch vs reference (f32)"

    # tiny ragged batch -> single boundary block
    xb = x[:10]
    vb = critic_forward(xb, params)
    jax.block_until_ready(vb)
    assert vb.shape == (10, 1)
    assert jnp.allclose(vb, ref[:10], atol=1e-4, rtol=1e-4), "mismatch vs reference (ragged small)"

    # ragged batch with a multi-step grid (last block is a boundary block)
    xm = x[:300]
    vm = critic_forward(xm, params)
    jax.block_until_ready(vm)
    assert vm.shape == (300, 1)
    assert jnp.allclose(vm, ref[:300], atol=1e-4, rtol=1e-4), "mismatch vs reference (ragged 300)"

    # bf16 fast path (v6e/v7x): bf16 weights AND caller-provided bf16 x,
    # f32 accumulation throughout.
    v16 = critic_forward(x.astype(jnp.bfloat16), params, use_bf16=True)
    jax.block_until_ready(v16)
    assert v16.shape == (batch, 1)
    assert jnp.allclose(v16, ref, atol=1e-1, rtol=1e-1), "mismatch vs reference (bf16)"

    print("KERNEL_OK")
</pallas_src>

<mosaic_0001>
module attributes {stable_mosaic.version = 11 : i64} {
  func.func @_critic_kernel(%arg0: i32, %arg1: memref<256x32xf32, #tpu.memory_space<vmem>>, %arg2: memref<32x256xf32, #tpu.memory_space<vmem>>, %arg3: memref<1x256xf32, #tpu.memory_space<vmem>>, %arg4: memref<256x128xf32, #tpu.memory_space<vmem>>, %arg5: memref<1x128xf32, #tpu.memory_space<vmem>>, %arg6: memref<1x128xf32, #tpu.memory_space<vmem>>, %arg7: memref<1x1xf32, #tpu.memory_space<vmem>>, %arg8: memref<1x256xf32, #tpu.memory_space<vmem>>) attributes {dimension_semantics = [#tpu.dimension_semantics<parallel>], iteration_bounds = array<i64: 2>, scalar_prefetch = 0 : i64, scratch_operands = 0 : i64, tpu.core_type = #tpu.core_type<tc>, window_params = [{transform_indices = @transform_0, window_bounds = array<i64: 256, 32>}, {pipeline_mode = #tpu.pipeline_mode<synchronous>, transform_indices = @transform_1, window_bounds = array<i64: 32, 256>}, {pipeline_mode = #tpu.pipeline_mode<synchronous>, transform_indices = @transform_2, window_bounds = array<i64: 1, 256>}, {pipeline_mode = #tpu.pipeline_mode<synchronous>, transform_indices = @transform_3, window_bounds = array<i64: 256, 128>}, {pipeline_mode = #tpu.pipeline_mode<synchronous>, transform_indices = @transform_4, window_bounds = array<i64: 1, 128>}, {pipeline_mode = #tpu.pipeline_mode<synchronous>, transform_indices = @transform_5, window_bounds = array<i64: 1, 128>}, {pipeline_mode = #tpu.pipeline_mode<synchronous>, transform_indices = @transform_6, window_bounds = array<i64: 1, 1>}, {transform_indices = @transform_7, window_bounds = array<i64: 1, 256>}]} {
    %c0 = arith.constant 0 : index
    %c0_0 = arith.constant 0 : index
    %0 = vector.load %arg1[%c0, %c0_0] : memref<256x32xf32, #tpu.memory_space<vmem>>, vector<256x32xf32>
    %c0_1 = arith.constant 0 : index
    %c0_2 = arith.constant 0 : index
    %1 = vector.load %arg2[%c0_1, %c0_2] : memref<32x256xf32, #tpu.memory_space<vmem>>, vector<32x256xf32>
    %cst = arith.constant dense<0.000000e+00> : vector<256x256xf32>
    %2 = tpu.matmul %0, %1, %cst {dimension_numbers = #tpu.dot_dimension_numbers<[1], [0], [0], [1], [0, 0, 1, 1], [], []>} : vector<256x32xf32>, vector<32x256xf32>, vector<256x256xf32> -> vector<256x256xf32>
    %c0_3 = arith.constant 0 : index
    %c0_4 = arith.constant 0 : index
    %3 = vector.load %arg3[%c0_3, %c0_4] : memref<1x256xf32, #tpu.memory_space<vmem>>, vector<1x256xf32>
    %4 = vector.broadcast %3 : vector<1x256xf32> to vector<256x256xf32>
    %5 = arith.addf %2, %4 : vector<256x256xf32>
    %cst_5 = arith.constant 0.000000e+00 : f32
    %6 = vector.broadcast %cst_5 : f32 to vector<256x256xf32>
    %7 = arith.maximumf %5, %6 : vector<256x256xf32>
    %c0_6 = arith.constant 0 : index
    %c0_7 = arith.constant 0 : index
    %8 = vector.load %arg4[%c0_6, %c0_7] : memref<256x128xf32, #tpu.memory_space<vmem>>, vector<256x128xf32>
    %cst_8 = arith.constant dense<0.000000e+00> : vector<256x128xf32>
    %9 = tpu.matmul %7, %8, %cst_8 {dimension_numbers = #tpu.dot_dimension_numbers<[1], [0], [0], [1], [0, 0, 1, 1], [], []>} : vector<256x256xf32>, vector<256x128xf32>, vector<256x128xf32> -> vector<256x128xf32>
    %c0_9 = arith.constant 0 : index
    %c0_10 = arith.constant 0 : index
    %10 = vector.load %arg5[%c0_9, %c0_10] : memref<1x128xf32, #tpu.memory_space<vmem>>, vector<1x128xf32>
    %11 = vector.broadcast %10 : vector<1x128xf32> to vector<256x128xf32>
    %12 = arith.addf %9, %11 : vector<256x128xf32>
    %cst_11 = arith.constant 0.000000e+00 : f32
    %13 = vector.broadcast %cst_11 : f32 to vector<256x128xf32>
    %14 = arith.maximumf %12, %13 : vector<256x128xf32>
    %c0_12 = arith.constant 0 : index
    %c0_13 = arith.constant 0 : index
    %15 = vector.load %arg6[%c0_12, %c0_13] : memref<1x128xf32, #tpu.memory_space<vmem>>, vector<1x128xf32>
    %cst_14 = arith.constant dense<0.000000e+00> : vector<1x256xf32>
    %16 = tpu.matmul %15, %14, %cst_14 {dimension_numbers = #tpu.dot_dimension_numbers<[1], [1], [0], [0], [0, 0, 1, 0], [], []>} : vector<1x128xf32>, vector<256x128xf32>, vector<1x256xf32> -> vector<1x256xf32>
    %c0_15 = arith.constant 0 : index
    %c0_16 = arith.constant 0 : index
    %17 = vector.load %arg7[%c0_15, %c0_16] : memref<1x1xf32, #tpu.memory_space<vmem>>, vector<1x1xf32>
    %18 = vector.broadcast %17 : vector<1x1xf32> to vector<1x256xf32>
    %19 = arith.addf %16, %18 : vector<1x256xf32>
    %c0_17 = arith.constant 0 : index
    %c0_18 = arith.constant 0 : index
    %20 = vector.load %arg8[%c0_17, %c0_18] : memref<1x256xf32, #tpu.memory_space<vmem>>, vector<1x256xf32>
    tpu.vector_store %arg8[%c0_17, %c0_18], %19 {strides = array<i32>} : memref<1x256xf32, #tpu.memory_space<vmem>>, vector<1x256xf32>,
    return
  }
  func.func @transform_0(%arg0: i32) -> (i32, i32) {
    %c0_i32 = arith.constant 0 : i32
    %c0_i32_0 = arith.constant 0 : i32
    return %arg0, %c0_i32 : i32, i32
  }
  func.func @transform_1(%arg0: i32) -> (i32, i32) {
    %c0_i32 = arith.constant 0 : i32
    %c0_i32_0 = arith.constant 0 : i32
    %c0_i32_1 = arith.constant 0 : i32
    return %c0_i32, %c0_i32_0 : i32, i32
  }
  func.func @transform_2(%arg0: i32) -> (i32, i32) {
    %c0_i32 = arith.constant 0 : i32
    %c0_i32_0 = arith.constant 0 : i32
    %c0_i32_1 = arith.constant 0 : i32
    return %c0_i32, %c0_i32_0 : i32, i32
  }
  func.func @transform_3(%arg0: i32) -> (i32, i32) {
    %c0_i32 = arith.constant 0 : i32
    %c0_i32_0 = arith.constant 0 : i32
    %c0_i32_1 = arith.constant 0 : i32
    return %c0_i32, %c0_i32_0 : i32, i32
  }
  func.func @transform_4(%arg0: i32) -> (i32, i32) {
    %c0_i32 = arith.constant 0 : i32
    %c0_i32_0 = arith.constant 0 : i32
    %c0_i32_1 = arith.constant 0 : i32
    return %c0_i32, %c0_i32_0 : i32, i32
  }
  func.func @transform_5(%arg0: i32) -> (i32, i32) {
    %c0_i32 = arith.constant 0 : i32
    %c0_i32_0 = arith.constant 0 : i32
    %c0_i32_1 = arith.constant 0 : i32
    return %c0_i32, %c0_i32_0 : i32, i32
  }
  func.func @transform_6(%arg0: i32) -> (i32, i32) {
    %c0_i32 = arith.constant 0 : i32
    %c0_i32_0 = arith.constant 0 : i32
    %c0_i32_1 = arith.constant 0 : i32
    return %c0_i32, %c0_i32_0 : i32, i32
  }
  func.func @transform_7(%arg0: i32) -> (i32, i32) {
    %c0_i32 = arith.constant 0 : i32
    %c0_i32_0 = arith.constant 0 : i32
    return %c0_i32, %arg0 : i32, i32
  }
}

</mosaic_0001>

<llo_original>
// kernel: tpu_custom_call.1
$region0: #{tpu_custom_call.1}
  #allocation0 [shape = 'u32[]', space=smem, size = 0x4, offset = 0x4, fixed_abs, tag = 'smem constant byte address 0x4 - core index']
  #allocation1 [shape = 'u32[72,128]{1,0:T(1,128)}', space=vmem, size = 0x9000, scoped, tag = 'internal scratch']
  #allocation2 [shape = 'f32[1,1]{1,0:T(1,128)S(1)}', space=vmem, size = 0x200, scoped, tag = 'scoped memory for tpu_custom_call.1']
  %s0 = inlined_call_operand.vmem [shape: f32[512,32], index: 0, kind: input, shape index: {}]
  %s1 = inlined_call_operand.vmem [shape: f32[32,256], index: 1, kind: input, shape index: {}]
  %s2 = inlined_call_operand.vmem [shape: f32[1,256], index: 2, kind: input, shape index: {}]
  %s3 = inlined_call_operand.vmem [shape: f32[256,128], index: 3, kind: input, shape index: {}]
  %s4 = inlined_call_operand.vmem [shape: f32[1,128], index: 4, kind: input, shape index: {}]
  %s5 = inlined_call_operand.vmem [shape: f32[1,128], index: 5, kind: input, shape index: {}]
  %s6 = inlined_call_operand.<no memory space> [shape: f32[1,1], index: 6, kind: input, shape index: {}]
  %s7 = inlined_call_operand.hbm [shape: f32[1,512], index: 7, kind: output, shape index: {}]
  %s8 = sld [smem:[#allocation0]]
  $region61: #{tpu_custom_call.1} parent=0
    _
  %s10 = ssub.s32 1, %s8
  %s11 = scalar_select 0, %s10, %s8
  %v12 = vstv %s6
  %13 = vst [vmem:[#allocation2] sm:$0x1] %v12
  $region1: #{tpu_custom_call.1} parent=0
    #allocation3 [shape = 'u8[2048]{0}', space=vmem, size = 0x800, scoped, tag = 'output window, operand 0']
    #allocation4 [shape = 's32[2]{0}', space=sflag, size = 0x8, scoped, tag = 'scoped memory for tpu_custom_call.1']
    %14 = vsyncpa [#allocation4], 0
    %s15 = scalar_lea.sflag [#allocation4], 1
    %16 = vsyncpa %s15, 0
    loop: start=0, step=1, limit=4
    $region2: #{tpu_custom_call.1} parent=1 // loop_pre_header
      _
    $region3: #{tpu_custom_call.1} parent=1 // loop_header
      %s18 = sphi 0, %s22
      %p19 = scmp.ge.s32.totalorder %s18, 4
      %s28 = sphi 0, %s30
      %s31 = sphi 0, %s28
      %s32 = sphi 0, %s31
      %s48 = sphi 0, %s32
      %s52 = sphi 0, %s52
      %s54 = sphi 0, %s52
      %s55 = sphi 0, %s54
      %s69 = sphi 0, %s55
      %s73 = sphi 0, %s73
      %s75 = sphi 0, %s73
      %s76 = sphi 0, %s75
      %s90 = sphi 0, %s76
      %s94 = sphi 0, %s94
      %s96 = sphi 0, %s94
      %s97 = sphi 0, %s96
      %s111 = sphi 0, %s97
      %s115 = sphi 0, %s115
      %s117 = sphi 0, %s115
      %s118 = sphi 0, %s117
      %s132 = sphi 0, %s118
      %s136 = sphi 0, %s136
      %s138 = sphi 0, %s136
      %s139 = sphi 0, %s138
      %s153 = sphi 0, %s139
      %s157 = sphi 0, %s157
      %s159 = sphi 0, %s157
      %s160 = sphi 0, %s159
      %s174 = sphi 0, %s160
      %s180 = sphi 0, %s182
      %s183 = sphi 0, %s180
      %s184 = sphi 0, %s183
      %s200 = sphi 0, %s184
    $region4: #{tpu_custom_call.1} parent=1 // loop_header_branch
      %21 = sbr.rel (%p19) target = $region8
    $region5: #{tpu_custom_call.1} parent=1 // loop_body
      %s23 = ssub.s32 %s18, 1
      %s24 = ssub.s32 %s18, 2
      %s25 = sadd.s32 %s18, 1
      %s26 = ssub.s32 %s18, %s25
      %p27 = scmp.eq.s32.totalorder %s26, 0
      %s29 = sadd.s32 %s28, 1
      %s30 = scalar_select %p27, %s28, %s29
      %p33 = pneg %p27
      %p34 = scmp.eq.s32.totalorder %s18, 1
      %p35 = por %p33, %p34
      %p36 = scmp.ne.s32.totalorder %s28, %s31
      %p37 = scmp.eq.s32.totalorder %s18, 0
      %p38 = por %p36, %p37
      %p39 = scmp.ne.s32.totalorder %s28, %s31
      %p40 = scmp.eq.s32.totalorder %s23, 1
      %p41 = por %p39, %p40
      %p42 = scmp.ne.s32.totalorder %s31, %s32
      %p43 = scmp.eq.s32.totalorder %s23, 0
      %p44 = por %p42, %p43
      %p45 = scmp.ne.s32.totalorder %s31, %s32
      %p46 = scmp.eq.s32.totalorder %s24, 1
      %p47 = por %p45, %p46
      %p49 = scmp.ne.s32.totalorder %s32, %s48
      %p50 = scmp.eq.s32.totalorder %s24, 0
      %p51 = por %p49, %p50
      %s53 = sadd.s32 %s52, 1
      %p56 = scmp.eq.s32.totalorder %s18, 1
      %p57 = scmp.ne.s32.totalorder %s52, %s54
      %p58 = scmp.eq.s32.totalorder %s18, 0
      %p59 = por %p57, %p58
      %p60 = scmp.ne.s32.totalorder %s52, %s54
      %p61 = scmp.eq.s32.totalorder %s23, 1
      %p62 = por %p60, %p61
      %p63 = scmp.ne.s32.totalorder %s54, %s55
      %p64 = scmp.eq.s32.totalorder %s23, 0
      %p65 = por %p63, %p64
      %p66 = scmp.ne.s32.totalorder %s54, %s55
      %p67 = scmp.eq.s32.totalorder %s24, 1
      %p68 = por %p66, %p67
      %p70 = scmp.ne.s32.totalorder %s55, %s69
      %p71 = scmp.eq.s32.totalorder %s24, 0
      %p72 = por %p70, %p71
      %s74 = sadd.s32 %s73, 1
      %p77 = scmp.eq.s32.totalorder %s18, 1
      %p78 = scmp.ne.s32.totalorder %s73, %s75
      %p79 = scmp.eq.s32.totalorder %s18, 0
      %p80 = por %p78, %p79
      %p81 = scmp.ne.s32.totalorder %s73, %s75
      %p82 = scmp.eq.s32.totalorder %s23, 1
      %p83 = por %p81, %p82
      %p84 = scmp.ne.s32.totalorder %s75, %s76
      %p85 = scmp.eq.s32.totalorder %s23, 0
      %p86 = por %p84, %p85
      %p87 = scmp.ne.s32.totalorder %s75, %s76
      %p88 = scmp.eq.s32.totalorder %s24, 1
      %p89 = por %p87, %p88
      %p91 = scmp.ne.s32.totalorder %s76, %s90
      %p92 = scmp.eq.s32.totalorder %s24, 0
      %p93 = por %p91, %p92
      %s95 = sadd.s32 %s94, 1
      %p98 = scmp.eq.s32.totalorder %s18, 1
      %p99 = scmp.ne.s32.totalorder %s94, %s96
      %p100 = scmp.eq.s32.totalorder %s18, 0
      %p101 = por %p99, %p100
      %p102 = scmp.ne.s32.totalorder %s94, %s96
      %p103 = scmp.eq.s32.totalorder %s23, 1
      %p104 = por %p102, %p103
      %p105 = scmp.ne.s32.totalorder %s96, %s97
      %p106 = scmp.eq.s32.totalorder %s23, 0
      %p107 = por %p105, %p106
      %p108 = scmp.ne.s32.totalorder %s96, %s97
      %p109 = scmp.eq.s32.totalorder %s24, 1
      %p110 = por %p108, %p109
      %p112 = scmp.ne.s32.totalorder %s97, %s111
      %p113 = scmp.eq.s32.totalorder %s24, 0
      %p114 = por %p112, %p113
      %s116 = sadd.s32 %s115, 1
      %p119 = scmp.eq.s32.totalorder %s18, 1
      %p120 = scmp.ne.s32.totalorder %s115, %s117
      %p121 = scmp.eq.s32.totalorder %s18, 0
      %p122 = por %p120, %p121
      %p123 = scmp.ne.s32.totalorder %s115, %s117
      %p124 = scmp.eq.s32.totalorder %s23, 1
      %p125 = por %p123, %p124
      %p126 = scmp.ne.s32.totalorder %s117, %s118
      %p127 = scmp.eq.s32.totalorder %s23, 0
      %p128 = por %p126, %p127
      %p129 = scmp.ne.s32.totalorder %s117, %s118
      %p130 = scmp.eq.s32.totalorder %s24, 1
      %p131 = por %p129, %p130
      %p133 = scmp.ne.s32.totalorder %s118, %s132
      %p134 = scmp.eq.s32.totalorder %s24, 0
      %p135 = por %p133, %p134
      %s137 = sadd.s32 %s136, 1
      %p140 = scmp.eq.s32.totalorder %s18, 1
      %p141 = scmp.ne.s32.totalorder %s136, %s138
      %p142 = scmp.eq.s32.totalorder %s18, 0
      %p143 = por %p141, %p142
      %p144 = scmp.ne.s32.totalorder %s136, %s138
      %p145 = scmp.eq.s32.totalorder %s23, 1
      %p146 = por %p144, %p145
      %p147 = scmp.ne.s32.totalorder %s138, %s139
      %p148 = scmp.eq.s32.totalorder %s23, 0
      %p149 = por %p147, %p148
      %p150 = scmp.ne.s32.totalorder %s138, %s139
      %p151 = scmp.eq.s32.totalorder %s24, 1
      %p152 = por %p150, %p151
      %p154 = scmp.ne.s32.totalorder %s139, %s153
      %p155 = scmp.eq.s32.totalorder %s24, 0
      %p156 = por %p154, %p155
      %s158 = sadd.s32 %s157, 1
      %p161 = scmp.eq.s32.totalorder %s18, 1
      %p162 = scmp.ne.s32.totalorder %s157, %s159
      %p163 = scmp.eq.s32.totalorder %s18, 0
      %p164 = por %p162, %p163
      %p165 = scmp.ne.s32.totalorder %s157, %s159
      %p166 = scmp.eq.s32.totalorder %s23, 1
      %p167 = por %p165, %p166
      %p168 = scmp.ne.s32.totalorder %s159, %s160
      %p169 = scmp.eq.s32.totalorder %s23, 0
      %p170 = por %p168, %p169
      %p171 = scmp.ne.s32.totalorder %s159, %s160
      %p172 = scmp.eq.s32.totalorder %s24, 1
      %p173 = por %p171, %p172
      %p175 = scmp.ne.s32.totalorder %s160, %s174
      %p176 = scmp.eq.s32.totalorder %s24, 0
      %p177 = por %p175, %p176
      %s178 = ssub.s32 %s18, %s25
      %p179 = scmp.eq.s32.totalorder %s178, 0
      %s181 = sadd.s32 %s180, 1
      %s182 = scalar_select %p179, %s180, %s181
      %p185 = pneg %p179
      %p186 = scmp.eq.s32.totalorder %s18, 1
      %p187 = por %p185, %p186
      %p188 = scmp.ne.s32.totalorder %s180, %s183
      %p189 = scmp.eq.s32.totalorder %s18, 0
      %p190 = por %p188, %p189
      %p191 = scmp.ne.s32.totalorder %s180, %s183
      %p192 = scmp.eq.s32.totalorder %s23, 1
      %p193 = por %p191, %p192
      %p194 = scmp.ne.s32.totalorder %s183, %s184
      %p195 = scmp.eq.s32.totalorder %s23, 0
      %p196 = por %p194, %p195
      %p197 = scmp.ne.s32.totalorder %s183, %s184
      %p198 = scmp.eq.s32.totalorder %s24, 1
      %p199 = por %p197, %p198
      %p201 = scmp.ne.s32.totalorder %s184, %s200
      %p202 = scmp.eq.s32.totalorder %s24, 0
      %p203 = por %p201, %p202
      %p204 = scmp.le.s32.totalorder 1, %s18
      %p205 = scmp.lt.s32.totalorder %s18, 3
      %p206 = pnand %p204, %p205
      %p207 = pneg %p206
      // Predicated region
      $region9: #{tpu_custom_call.1} parent=5 // pred_check
        _
      $region10: #{tpu_custom_call.1} parent=5 // pred_check_branch
        %209 = sbr.rel (%p206) target = $region12
      $region11: #{tpu_custom_call.1} parent=5 // pred_region
        %s210 = ssub.s32 %s18, 1
        // Predicated region
        $region13: #{tpu_custom_call.1} parent=11 // pred_check
          %p211 = pneg %p65
        $region14: #{tpu_custom_call.1} parent=11 // pred_check_branch
          %213 = sbr.rel (%p211) target = $region16
        $region15: #{tpu_custom_call.1} parent=11 // pred_region
          _
        $region16: #{tpu_custom_call.1} parent=11 // pred_fallthru
          _
        // Predicated region
        $region17: #{tpu_custom_call.1} parent=11 // pred_check
          %p214 = pneg %p86
        $region18: #{tpu_custom_call.1} parent=11 // pred_check_branch
          %216 = sbr.rel (%p214) target = $region20
        $region19: #{tpu_custom_call.1} parent=11 // pred_region
          _
        $region20: #{tpu_custom_call.1} parent=11 // pred_fallthru
          _
        // Predicated region
        $region21: #{tpu_custom_call.1} parent=11 // pred_check
          %p217 = pneg %p107
        $region22: #{tpu_custom_call.1} parent=11 // pred_check_branch
          %219 = sbr.rel (%p217) target = $region24
        $region23: #{tpu_custom_call.1} parent=11 // pred_region
          _
        $region24: #{tpu_custom_call.1} parent=11 // pred_fallthru
          _
        // Predicated region
        $region25: #{tpu_custom_call.1} parent=11 // pred_check
          %p220 = pneg %p128
        $region26: #{tpu_custom_call.1} parent=11 // pred_check_branch
          %222 = sbr.rel (%p220) target = $region28
        $region27: #{tpu_custom_call.1} parent=11 // pred_region
          _
        $region28: #{tpu_custom_call.1} parent=11 // pred_fallthru
          _
        // Predicated region
        $region29: #{tpu_custom_call.1} parent=11 // pred_check
          %p223 = pneg %p149
        $region30: #{tpu_custom_call.1} parent=11 // pred_check_branch
          %225 = sbr.rel (%p223) target = $region32
        $region31: #{tpu_custom_call.1} parent=11 // pred_region
          _
        $region32: #{tpu_custom_call.1} parent=11 // pred_fallthru
          _
        // Predicated region
        $region33: #{tpu_custom_call.1} parent=11 // pred_check
          %p226 = pneg %p170
        $region34: #{tpu_custom_call.1} parent=11 // pred_check_branch
          %228 = sbr.rel (%p226) target = $region36
        $region35: #{tpu_custom_call.1} parent=11 // pred_region
          _
        $region36: #{tpu_custom_call.1} parent=11 // pred_fallthru
          _
      $region12: #{tpu_custom_call.1} parent=5 // pred_fallthru
        _
      %p229 = scmp.lt.s32.totalorder %s18, 2
      // Predicated region
      $region37: #{tpu_custom_call.1} parent=5 // pred_check
        %p230 = pneg %p229
      $region38: #{tpu_custom_call.1} parent=5 // pred_check_branch
        %232 = sbr.rel (%p230) target = $region40
      $region39: #{tpu_custom_call.1} parent=5 // pred_region
        // Predicated region
        $region41: #{tpu_custom_call.1} parent=39 // pred_check
          %p233 = pneg %p38
        $region42: #{tpu_custom_call.1} parent=39 // pred_check_branch
          %235 = sbr.rel (%p233) target = $region44
        $region43: #{tpu_custom_call.1} parent=39 // pred_region
          %s236 = smul.u32 32, %s18
          %p237 = scmp.lt.s32.totalorder %s236, 63
          %s238 = scalar_select %p237, %s236, 63
          %s239 = smul.addr %s238, 8
          %s240 = scalar_lea.vmem %s0, %s239
          %s241 = smul.u32 32, %s18
        $region44: #{tpu_custom_call.1} parent=39 // pred_fallthru
          _
      $region40: #{tpu_custom_call.1} parent=5 // pred_fallthru
        _
      %p242 = scmp.le.s32.totalorder 1, %s18
      %p243 = scmp.lt.s32.totalorder %s18, 3
      %p244 = pnand %p242, %p243
      %p245 = pneg %p244
      // Predicated region
      $region45: #{tpu_custom_call.1} parent=5 // pred_check
        _
      $region46: #{tpu_custom_call.1} parent=5 // pred_check_branch
        %247 = sbr.rel (%p244) target = $region48
      $region47: #{tpu_custom_call.1} parent=5 // pred_region
        %s248 = ssub.s32 %s18, 1
        %s249 = smul.u32 32, %s23
        %p250 = scmp.lt.s32.totalorder %s249, 63
        %s251 = scalar_select %p250, %s249, 63
        %s252 = smul.addr %s251, 8
        %s253 = scalar_lea.vmem %s0, %s252
        %p254 = pneg %p44
        %p255 = pneg %p41
        %p256 = pneg %p65
        %p257 = pneg %p62
        %p258 = pneg %p86
        %p259 = pneg %p83
        %p260 = pneg %p107
        %p261 = pneg %p104
        %p262 = pneg %p128
        %p263 = pneg %p125
        %p264 = pneg %p149
        %p265 = pneg %p146
        %p266 = pneg %p170
        %p267 = pneg %p167
        %p268 = pneg %p196
        %p269 = pneg %p193
        %s270 = sand.u32 %s183, 1
        %s271 = scalar_lea.sflag [#allocation4], %s270
        %s272 = sand.u32 %s183, 1
        %s273 = smul.addr %s272, 2
        %s274 = scalar_lea.vmem [#allocation3], %s273
        %s275 = smul.u32 32, %s23
        %p276 = scmp.lt.s32.totalorder %s275, 63
        %s277 = scalar_select %p276, %s275, 63
        %s278 = smul.addr %s277, 8
        %s279 = scalar_lea.vmem %s0, %s278
        %s280 = smul.u32 32, %s23
        %s281 = smul.u32 2, %s23
        %v282 = vld [vmem:[%s279] sm:$0xff]
        %v283 = vld [vmem:[%s279 + $0x8] sm:$0xff]
        %v284 = vld [vmem:[%s279 + $0x10] sm:$0xff]
        %v285 = vld [vmem:[%s279 + $0x18] sm:$0xff]
        %v286 = vld [vmem:[%s279 + $0x20] sm:$0xff]
        %v287 = vld [vmem:[%s279 + $0x28] sm:$0xff]
        %v288 = vld [vmem:[%s279 + $0x30] sm:$0xff]
        %v289 = vld [vmem:[%s279 + $0x38] sm:$0xff]
        %v290 = vld [vmem:[%s279 + $0x40] sm:$0xff]
        %v291 = vld [vmem:[%s279 + $0x48] sm:$0xff]
        %v292 = vld [vmem:[%s279 + $0x50] sm:$0xff]
        %v293 = vld [vmem:[%s279 + $0x58] sm:$0xff]
        %v294 = vld [vmem:[%s279 + $0x60] sm:$0xff]
        %v295 = vld [vmem:[%s279 + $0x68] sm:$0xff]
        %v296 = vld [vmem:[%s279 + $0x70] sm:$0xff]
        %v297 = vld [vmem:[%s279 + $0x78] sm:$0xff]
        %v298 = vld [vmem:[%s279 + $0x80] sm:$0xff]
        %v299 = vld [vmem:[%s279 + $0x88] sm:$0xff]
        %v300 = vld [vmem:[%s279 + $0x90] sm:$0xff]
        %v301 = vld [vmem:[%s279 + $0x98] sm:$0xff]
        %v302 = vld [vmem:[%s279 + $0xa0] sm:$0xff]
        %v303 = vld [vmem:[%s279 + $0xa8] sm:$0xff]
        %v304 = vld [vmem:[%s279 + $0xb0] sm:$0xff]
        %v305 = vld [vmem:[%s279 + $0xb8] sm:$0xff]
        %v306 = vld [vmem:[%s279 + $0xc0] sm:$0xff]
        %v307 = vld [vmem:[%s279 + $0xc8] sm:$0xff]
        %v308 = vld [vmem:[%s279 + $0xd0] sm:$0xff]
        %v309 = vld [vmem:[%s279 + $0xd8] sm:$0xff]
        %v310 = vld [vmem:[%s279 + $0xe0] sm:$0xff]
        %v311 = vld [vmem:[%s279 + $0xe8] sm:$0xff]
        %v312 = vld [vmem:[%s279 + $0xf0] sm:$0xff]
        %v313 = vld [vmem:[%s279 + $0xf8] sm:$0xff]
        %v314 = vld [vmem:[%s1] sm:$0xff]
        %v315 = vld [vmem:[%s1 + $0x8] sm:$0xff]
        %v316 = vld [vmem:[%s1 + $0x10] sm:$0xff]
        %v317 = vld [vmem:[%s1 + $0x18] sm:$0xff]
        %v318 = vld [vmem:[%s1 + $0x20] sm:$0xff]
        %v319 = vld [vmem:[%s1 + $0x28] sm:$0xff]
        %v320 = vld [vmem:[%s1 + $0x30] sm:$0xff]
        %v321 = vld [vmem:[%s1 + $0x38] sm:$0xff]
        %v322 = vld [vmem:[%s2] sm:$0x3]
        %v324 = vperm.slane %v322, 0
        %v325 = vperm.slane %v322, 1
        %vm328 = vcmask 261120
        %v330 = vsel %vm328, %v282, 0
        %v333 = vsel %vm328, %v283, 0
        %v336 = vsel %vm328, %v284, 0
        %v339 = vsel %vm328, %v285, 0
        %v342 = vsel %vm328, %v286, 0
        %v345 = vsel %vm328, %v287, 0
        %v348 = vsel %vm328, %v288, 0
        %v351 = vsel %vm328, %v289, 0
        %v354 = vsel %vm328, %v290, 0
        %v357 = vsel %vm328, %v291, 0
        %v360 = vsel %vm328, %v292, 0
        %v363 = vsel %vm328, %v293, 0
        %v366 = vsel %vm328, %v294, 0
        %v369 = vsel %vm328, %v295, 0
        %v372 = vsel %vm328, %v296, 0
        %v375 = vsel %vm328, %v297, 0
        %v378 = vsel %vm328, %v298, 0
        %v381 = vsel %vm328, %v299, 0
        %v384 = vsel %vm328, %v300, 0
        %v387 = vsel %vm328, %v301, 0
        %v390 = vsel %vm328, %v302, 0
        %v393 = vsel %vm328, %v303, 0
        %v396 = vsel %vm328, %v304, 0
        %v399 = vsel %vm328, %v305, 0
        %v402 = vsel %vm328, %v306, 0
        %v405 = vsel %vm328, %v307, 0
        %v408 = vsel %vm328, %v308, 0
        %v411 = vsel %vm328, %v309, 0
        %v414 = vsel %vm328, %v310, 0
        %v417 = vsel %vm328, %v311, 0
        %v420 = vsel %vm328, %v312, 0
        %v423 = vsel %vm328, %v313, 0
        %425 = vmatpush.msra.mxu0 0.0
        %426 = vmatpush.msra.mxu0 0.0
        %427 = vmatpush.msra.mxu0 0.0
        %428 = vmatpush.msra.mxu0 0.0
        %429 = vmatpush.msra.mxu0 0.0
        %430 = vmatpush.msra.mxu0 0.0
        %431 = vmatpush.msra.mxu0 0.0
        %432 = vmatpush.msra.mxu0 0.0
        %433 = vmatpush.msra.mxu0 0.0
        %434 = vmatpush.msra.mxu0 0.0
        %435 = vmatpush.msra.mxu0 0.0
        %436 = vmatpush.msra.mxu0 0.0
        %437 = vmatpush.msra.mxu0 %v320
        %438 = vmatpush.msra.mxu0 %v318
        %439 = vmatpush.msra.mxu0 %v316
        %440 = vmatpush.msra.mxu0 %v314
        %441 = vmatmul.f32.gmra.mxu0 %v330
        %v442 = vpop.f32.mrf.mxu0
        %v443 = vadd.f32 %v324, %v442
        %444 = vmatmul.f32.gmra.mxu0 %v333
        %v445 = vpop.f32.mrf.mxu0
        %v446 = vadd.f32 %v324, %v445
        %447 = vmatmul.f32.gmra.mxu0 %v336
        %v448 = vpop.f32.mrf.mxu0
        %v449 = vadd.f32 %v324, %v448
        %450 = vmatmul.f32.gmra.mxu0 %v339
        %v451 = vpop.f32.mrf.mxu0
        %v452 = vadd.f32 %v324, %v451
        %453 = vmatmul.f32.gmra.mxu0 %v342
        %v454 = vpop.f32.mrf.mxu0
        %v455 = vadd.f32 %v324, %v454
        %456 = vmatmul.f32.gmra.mxu0 %v345
        %v457 = vpop.f32.mrf.mxu0
        %v458 = vadd.f32 %v324, %v457
        %459 = vmatmul.f32.gmra.mxu0 %v348
        %v460 = vpop.f32.mrf.mxu0
        %v461 = vadd.f32 %v324, %v460
        %462 = vmatmul.f32.gmra.mxu0 %v351
        %v463 = vpop.f32.mrf.mxu0
        %v464 = vadd.f32 %v324, %v463
        %465 = vmatmul.f32.gmra.mxu0 %v354
        %v466 = vpop.f32.mrf.mxu0
        %v467 = vadd.f32 %v324, %v466
        %468 = vmatmul.f32.gmra.mxu0 %v357
        %v469 = vpop.f32.mrf.mxu0
        %v470 = vadd.f32 %v324, %v469
        %471 = vmatmul.f32.gmra.mxu0 %v360
        %v472 = vpop.f32.mrf.mxu0
        %v473 = vadd.f32 %v324, %v472
        %474 = vmatmul.f32.gmra.mxu0 %v363
        %v475 = vpop.f32.mrf.mxu0
        %v476 = vadd.f32 %v324, %v475
        %477 = vmatmul.f32.gmra.mxu0 %v366
        %v478 = vpop.f32.mrf.mxu0
        %v479 = vadd.f32 %v324, %v478
        %480 = vmatmul.f32.gmra.mxu0 %v369
        %v481 = vpop.f32.mrf.mxu0
        %v482 = vadd.f32 %v324, %v481
        %483 = vmatmul.f32.gmra.mxu0 %v372
        %v484 = vpop.f32.mrf.mxu0
        %v485 = vadd.f32 %v324, %v484
        %486 = vmatmul.f32.gmra.mxu0 %v375
        %v487 = vpop.f32.mrf.mxu0
        %v488 = vadd.f32 %v324, %v487
        %489 = vmatmul.f32.gmra.mxu0 %v378
        %v490 = vpop.f32.mrf.mxu0
        %v491 = vadd.f32 %v324, %v490
        %492 = vmatmul.f32.gmra.mxu0 %v381
        %v493 = vpop.f32.mrf.mxu0
        %v494 = vadd.f32 %v324, %v493
        %495 = vmatmul.f32.gmra.mxu0 %v384
        %v496 = vpop.f32.mrf.mxu0
        %v497 = vadd.f32 %v324, %v496
        %498 = vmatmul.f32.gmra.mxu0 %v387
        %v499 = vpop.f32.mrf.mxu0
        %v500 = vadd.f32 %v324, %v499
        %501 = vmatmul.f32.gmra.mxu0 %v390
        %v502 = vpop.f32.mrf.mxu0
        %v503 = vadd.f32 %v324, %v502
        %504 = vmatmul.f32.gmra.mxu0 %v393
        %v505 = vpop.f32.mrf.mxu0
        %v506 = vadd.f32 %v324, %v505
        %507 = vmatmul.f32.gmra.mxu0 %v396
        %v508 = vpop.f32.mrf.mxu0
        %v509 = vadd.f32 %v324, %v508
        %510 = vmatmul.f32.gmra.mxu0 %v399
        %v511 = vpop.f32.mrf.mxu0
        %v512 = vadd.f32 %v324, %v511
        %513 = vmatmul.f32.gmra.mxu0 %v402
        %v514 = vpop.f32.mrf.mxu0
        %v515 = vadd.f32 %v324, %v514
        %516 = vmatmul.f32.gmra.mxu0 %v405
        %v517 = vpop.f32.mrf.mxu0
        %v518 = vadd.f32 %v324, %v517
        %519 = vmatmul.f32.gmra.mxu0 %v408
        %v520 = vpop.f32.mrf.mxu0
        %v521 = vadd.f32 %v324, %v520
        %522 = vmatmul.f32.gmra.mxu0 %v411
        %v523 = vpop.f32.mrf.mxu0
        %v524 = vadd.f32 %v324, %v523
        %525 = vmatmul.f32.gmra.mxu0 %v414
        %v526 = vpop.f32.mrf.mxu0
        %v527 = vadd.f32 %v324, %v526
        %528 = vmatmul.f32.gmra.mxu0 %v417
        %v529 = vpop.f32.mrf.mxu0
        %v530 = vadd.f32 %v324, %v529
        %531 = vmatmul.f32.gmra.mxu0 %v420
        %v532 = vpop.f32.mrf.mxu0
        %v533 = vadd.f32 %v324, %v532
        %534 = vmatmul.f32.gmra.mxu0 %v423
        %v535 = vpop.f32.mrf.mxu0
        %v536 = vadd.f32 %v324, %v535
        %537 = vdwg.mxu0
        %538 = vmatpush.msra.mxu0 0.0
        %539 = vmatpush.msra.mxu0 0.0
        %540 = vmatpush.msra.mxu0 0.0
        %541 = vmatpush.msra.mxu0 0.0
        %542 = vmatpush.msra.mxu0 0.0
        %543 = vmatpush.msra.mxu0 0.0
        %544 = vmatpush.msra.mxu0 0.0
        %545 = vmatpush.msra.mxu0 0.0
        %546 = vmatpush.msra.mxu0 0.0
        %547 = vmatpush.msra.mxu0 0.0
        %548 = vmatpush.msra.mxu0 0.0
        %549 = vmatpush.msra.mxu0 0.0
        %550 = vmatpush.msra.mxu0 %v321
        %551 = vmatpush.msra.mxu0 %v319
        %552 = vmatpush.msra.mxu0 %v317
        %553 = vmatpush.msra.mxu0 %v315
        %554 = vmatmul.f32.gmra.mxu0 %v330
        %v555 = vpop.f32.mrf.mxu0
        %v556 = vadd.f32 %v325, %v555
        %557 = vmatmul.f32.gmra.mxu0 %v333
        %v558 = vpop.f32.mrf.mxu0
        %v559 = vadd.f32 %v325, %v558
        %560 = vmatmul.f32.gmra.mxu0 %v336
        %v561 = vpop.f32.mrf.mxu0
        %v562 = vadd.f32 %v325, %v561
        %563 = vmatmul.f32.gmra.mxu0 %v339
        %v564 = vpop.f32.mrf.mxu0
        %v565 = vadd.f32 %v325, %v564
        %566 = vmatmul.f32.gmra.mxu0 %v342
        %v567 = vpop.f32.mrf.mxu0
        %v568 = vadd.f32 %v325, %v567
        %569 = vmatmul.f32.gmra.mxu0 %v345
        %v570 = vpop.f32.mrf.mxu0
        %v571 = vadd.f32 %v325, %v570
        %572 = vmatmul.f32.gmra.mxu0 %v348
        %v573 = vpop.f32.mrf.mxu0
        %v574 = vadd.f32 %v325, %v573
        %575 = vmatmul.f32.gmra.mxu0 %v351
        %v576 = vpop.f32.mrf.mxu0
        %v577 = vadd.f32 %v325, %v576
        %578 = vmatmul.f32.gmra.mxu0 %v354
        %v579 = vpop.f32.mrf.mxu0
        %v580 = vadd.f32 %v325, %v579
        %581 = vmatmul.f32.gmra.mxu0 %v357
        %v582 = vpop.f32.mrf.mxu0
        %v583 = vadd.f32 %v325, %v582
        %584 = vmatmul.f32.gmra.mxu0 %v360
        %v585 = vpop.f32.mrf.mxu0
        %v586 = vadd.f32 %v325, %v585
        %587 = vmatmul.f32.gmra.mxu0 %v363
        %v588 = vpop.f32.mrf.mxu0
        %v589 = vadd.f32 %v325, %v588
        %590 = vmatmul.f32.gmra.mxu0 %v366
        %v591 = vpop.f32.mrf.mxu0
        %v592 = vadd.f32 %v325, %v591
        %593 = vmatmul.f32.gmra.mxu0 %v369
        %v594 = vpop.f32.mrf.mxu0
        %v595 = vadd.f32 %v325, %v594
        %596 = vmatmul.f32.gmra.mxu0 %v372
        %v597 = vpop.f32.mrf.mxu0
        %v598 = vadd.f32 %v325, %v597
        %599 = vmatmul.f32.gmra.mxu0 %v375
        %v600 = vpop.f32.mrf.mxu0
        %v601 = vadd.f32 %v325, %v600
        %602 = vmatmul.f32.gmra.mxu0 %v378
        %v603 = vpop.f32.mrf.mxu0
        %v604 = vadd.f32 %v325, %v603
        %605 = vmatmul.f32.gmra.mxu0 %v381
        %v606 = vpop.f32.mrf.mxu0
        %v607 = vadd.f32 %v325, %v606
        %608 = vmatmul.f32.gmra.mxu0 %v384
        %v609 = vpop.f32.mrf.mxu0
        %v610 = vadd.f32 %v325, %v609
        %611 = vmatmul.f32.gmra.mxu0 %v387
        %v612 = vpop.f32.mrf.mxu0
        %v613 = vadd.f32 %v325, %v612
        %614 = vmatmul.f32.gmra.mxu0 %v390
        %v615 = vpop.f32.mrf.mxu0
        %v616 = vadd.f32 %v325, %v615
        %617 = vmatmul.f32.gmra.mxu0 %v393
        %v618 = vpop.f32.mrf.mxu0
        %v619 = vadd.f32 %v325, %v618
        %620 = vmatmul.f32.gmra.mxu0 %v396
        %v621 = vpop.f32.mrf.mxu0
        %v622 = vadd.f32 %v325, %v621
        %623 = vmatmul.f32.gmra.mxu0 %v399
        %v624 = vpop.f32.mrf.mxu0
        %v625 = vadd.f32 %v325, %v624
        %626 = vmatmul.f32.gmra.mxu0 %v402
        %v627 = vpop.f32.mrf.mxu0
        %v628 = vadd.f32 %v325, %v627
        %629 = vmatmul.f32.gmra.mxu0 %v405
        %v630 = vpop.f32.mrf.mxu0
        %v631 = vadd.f32 %v325, %v630
        %632 = vmatmul.f32.gmra.mxu0 %v408
        %v633 = vpop.f32.mrf.mxu0
        %v634 = vadd.f32 %v325, %v633
        %635 = vmatmul.f32.gmra.mxu0 %v411
        %v636 = vpop.f32.mrf.mxu0
        %v637 = vadd.f32 %v325, %v636
        %638 = vmatmul.f32.gmra.mxu0 %v414
        %v639 = vpop.f32.mrf.mxu0
        %v640 = vadd.f32 %v325, %v639
        %641 = vmatmul.f32.gmra.mxu0 %v417
        %v642 = vpop.f32.mrf.mxu0
        %v643 = vadd.f32 %v325, %v642
        %644 = vmatmul.f32.gmra.mxu0 %v420
        %v645 = vpop.f32.mrf.mxu0
        %v646 = vadd.f32 %v325, %v645
        %647 = vmatmul.f32.gmra.mxu0 %v423
        %v648 = vpop.f32.mrf.mxu0
        %v649 = vadd.f32 %v325, %v648
        %650 = vdwg.mxu0
        %v651 = vmax.f32 %v443, 0.0
        %v652 = vmax.f32 %v556, 0.0
        %v653 = vmax.f32 %v446, 0.0
        %v654 = vmax.f32 %v559, 0.0
        %v655 = vmax.f32 %v449, 0.0
        %v656 = vmax.f32 %v562, 0.0
        %v657 = vmax.f32 %v452, 0.0
        %v658 = vmax.f32 %v565, 0.0
        %v659 = vmax.f32 %v455, 0.0
        %v660 = vmax.f32 %v568, 0.0
        %v661 = vmax.f32 %v458, 0.0
        %v662 = vmax.f32 %v571, 0.0
        %v663 = vmax.f32 %v461, 0.0
        %v664 = vmax.f32 %v574, 0.0
        %v665 = vmax.f32 %v464, 0.0
        %v666 = vmax.f32 %v577, 0.0
        %v667 = vmax.f32 %v467, 0.0
        %v668 = vmax.f32 %v580, 0.0
        %v669 = vmax.f32 %v470, 0.0
        %v670 = vmax.f32 %v583, 0.0
        %v671 = vmax.f32 %v473, 0.0
        %v672 = vmax.f32 %v586, 0.0
        %v673 = vmax.f32 %v476, 0.0
        %v674 = vmax.f32 %v589, 0.0
        %v675 = vmax.f32 %v479, 0.0
        %v676 = vmax.f32 %v592, 0.0
        %v677 = vmax.f32 %v482, 0.0
        %v678 = vmax.f32 %v595, 0.0
        %v679 = vmax.f32 %v485, 0.0
        %v680 = vmax.f32 %v598, 0.0
        %v681 = vmax.f32 %v488, 0.0
        %v682 = vmax.f32 %v601, 0.0
        %v683 = vmax.f32 %v491, 0.0
        %v684 = vmax.f32 %v604, 0.0
        %v685 = vmax.f32 %v494, 0.0
        %v686 = vmax.f32 %v607, 0.0
        %v687 = vmax.f32 %v497, 0.0
        %v688 = vmax.f32 %v610, 0.0
        %v689 = vmax.f32 %v500, 0.0
        %v690 = vmax.f32 %v613, 0.0
        %v691 = vmax.f32 %v503, 0.0
        %v692 = vmax.f32 %v616, 0.0
        %v693 = vmax.f32 %v506, 0.0
        %v694 = vmax.f32 %v619, 0.0
        %v695 = vmax.f32 %v509, 0.0
        %v696 = vmax.f32 %v622, 0.0
        %v697 = vmax.f32 %v512, 0.0
        %v698 = vmax.f32 %v625, 0.0
        %v699 = vmax.f32 %v515, 0.0
        %v700 = vmax.f32 %v628, 0.0
        %v701 = vmax.f32 %v518, 0.0
        %v702 = vmax.f32 %v631, 0.0
        %v703 = vmax.f32 %v521, 0.0
        %v704 = vmax.f32 %v634, 0.0
        %v705 = vmax.f32 %v524, 0.0
        %v706 = vmax.f32 %v637, 0.0
        %v707 = vmax.f32 %v527, 0.0
        %v708 = vmax.f32 %v640, 0.0
        %v709 = vmax.f32 %v530, 0.0
        %v710 = vmax.f32 %v643, 0.0
        %v711 = vmax.f32 %v533, 0.0
        %v712 = vmax.f32 %v646, 0.0
        %v713 = vmax.f32 %v536, 0.0
        %v714 = vmax.f32 %v649, 0.0
        %v715 = vld [vmem:[%s3] sm:$0xff]
        %v716 = vld [vmem:[%s3 + $0x8] sm:$0xff]
        %v717 = vld [vmem:[%s3 + $0x10] sm:$0xff]
        %v718 = vld [vmem:[%s3 + $0x18] sm:$0xff]
        %v719 = vld [vmem:[%s3 + $0x20] sm:$0xff]
        %v720 = vld [vmem:[%s3 + $0x28] sm:$0xff]
        %v721 = vld [vmem:[%s3 + $0x30] sm:$0xff]
        %v722 = vld [vmem:[%s3 + $0x38] sm:$0xff]
        %v723 = vld [vmem:[%s3 + $0x40] sm:$0xff]
        %v724 = vld [vmem:[%s3 + $0x48] sm:$0xff]
        %v725 = vld [vmem:[%s3 + $0x50] sm:$0xff]
        %v726 = vld [vmem:[%s3 + $0x58] sm:$0xff]
        %v727 = vld [vmem:[%s3 + $0x60] sm:$0xff]
        %v728 = vld [vmem:[%s3 + $0x68] sm:$0xff]
        %v729 = vld [vmem:[%s3 + $0x70] sm:$0xff]
        %v730 = vld [vmem:[%s3 + $0x78] sm:$0xff]
        %v731 = vld [vmem:[%s3 + $0x80] sm:$0xff]
        %v732 = vld [vmem:[%s3 + $0x88] sm:$0xff]
        %v733 = vld [vmem:[%s3 + $0x90] sm:$0xff]
        %v734 = vld [vmem:[%s3 + $0x98] sm:$0xff]
        %v735 = vld [vmem:[%s3 + $0xa0] sm:$0xff]
        %v736 = vld [vmem:[%s3 + $0xa8] sm:$0xff]
        %v737 = vld [vmem:[%s3 + $0xb0] sm:$0xff]
        %v738 = vld [vmem:[%s3 + $0xb8] sm:$0xff]
        %v739 = vld [vmem:[%s3 + $0xc0] sm:$0xff]
        %v740 = vld [vmem:[%s3 + $0xc8] sm:$0xff]
        %v741 = vld [vmem:[%s3 + $0xd0] sm:$0xff]
        %v742 = vld [vmem:[%s3 + $0xd8] sm:$0xff]
        %v743 = vld [vmem:[%s3 + $0xe0] sm:$0xff]
        %v744 = vld [vmem:[%s3 + $0xe8] sm:$0xff]
        %v745 = vld [vmem:[%s3 + $0xf0] sm:$0xff]
        %v746 = vld [vmem:[%s3 + $0xf8] sm:$0xff]
        %v747 = vld [vmem:[%s4] sm:$0x1]
        %v749 = vperm.slane %v747, 0
        %751 = vmatpush.msra.mxu0 %v730
        %752 = vmatpush.msra.mxu0 %v729
        %753 = vmatpush.msra.mxu0 %v728
        %754 = vmatpush.msra.mxu0 %v727
        %755 = vmatpush.msra.mxu0 %v726
        %756 = vmatpush.msra.mxu0 %v725
        %757 = vmatpush.msra.mxu0 %v724
        %758 = vmatpush.msra.mxu0 %v723
        %759 = vmatpush.msra.mxu0 %v722
        %760 = vmatpush.msra.mxu0 %v721
        %761 = vmatpush.msra.mxu0 %v720
        %762 = vmatpush.msra.mxu0 %v719
        %763 = vmatpush.msra.mxu0 %v718
        %764 = vmatpush.msra.mxu0 %v717
        %765 = vmatpush.msra.mxu0 %v716
        %766 = vmatpush.msra.mxu0 %v715
        %767 = vmatmul.f32.gmra.mxu0 %v651
        %v768 = vpop.f32.mrf.mxu0
        %v769 = vadd.f32 %v749, %v768
        %770 = vmatmul.f32.gmra.mxu0 %v653
        %v771 = vpop.f32.mrf.mxu0
        %v772 = vadd.f32 %v749, %v771
        %773 = vmatmul.f32.gmra.mxu0 %v655
        %v774 = vpop.f32.mrf.mxu0
        %v775 = vadd.f32 %v749, %v774
        %776 = vmatmul.f32.gmra.mxu0 %v657
        %v777 = vpop.f32.mrf.mxu0
        %v778 = vadd.f32 %v749, %v777
        %779 = vmatmul.f32.gmra.mxu0 %v659
        %v780 = vpop.f32.mrf.mxu0
        %v781 = vadd.f32 %v749, %v780
        %782 = vmatmul.f32.gmra.mxu0 %v661
        %v783 = vpop.f32.mrf.mxu0
        %v784 = vadd.f32 %v749, %v783
        %785 = vmatmul.f32.gmra.mxu0 %v663
        %v786 = vpop.f32.mrf.mxu0
        %v787 = vadd.f32 %v749, %v786
        %788 = vmatmul.f32.gmra.mxu0 %v665
        %v789 = vpop.f32.mrf.mxu0
        %v790 = vadd.f32 %v749, %v789
        %791 = vmatmul.f32.gmra.mxu0 %v667
        %v792 = vpop.f32.mrf.mxu0
        %v793 = vadd.f32 %v749, %v792
        %794 = vmatmul.f32.gmra.mxu0 %v669
        %v795 = vpop.f32.mrf.mxu0
        %v796 = vadd.f32 %v749, %v795
        %797 = vmatmul.f32.gmra.mxu0 %v671
        %v798 = vpop.f32.mrf.mxu0
        %v799 = vadd.f32 %v749, %v798
        %800 = vmatmul.f32.gmra.mxu0 %v673
        %v801 = vpop.f32.mrf.mxu0
        %v802 = vadd.f32 %v749, %v801
        %803 = vmatmul.f32.gmra.mxu0 %v675
        %v804 = vpop.f32.mrf.mxu0
        %v805 = vadd.f32 %v749, %v804
        %806 = vmatmul.f32.gmra.mxu0 %v677
        %v807 = vpop.f32.mrf.mxu0
        %v808 = vadd.f32 %v749, %v807
        %809 = vmatmul.f32.gmra.mxu0 %v679
        %v810 = vpop.f32.mrf.mxu0
        %v811 = vadd.f32 %v749, %v810
        %812 = vmatmul.f32.gmra.mxu0 %v681
        %v813 = vpop.f32.mrf.mxu0
        %v814 = vadd.f32 %v749, %v813
        %815 = vmatmul.f32.gmra.mxu0 %v683
        %v816 = vpop.f32.mrf.mxu0
        %v817 = vadd.f32 %v749, %v816
        %818 = vmatmul.f32.gmra.mxu0 %v685
        %v819 = vpop.f32.mrf.mxu0
        %v820 = vadd.f32 %v749, %v819
        %821 = vmatmul.f32.gmra.mxu0 %v687
        %v822 = vpop.f32.mrf.mxu0
        %v823 = vadd.f32 %v749, %v822
        %824 = vmatmul.f32.gmra.mxu0 %v689
        %v825 = vpop.f32.mrf.mxu0
        %v826 = vadd.f32 %v749, %v825
        %827 = vmatmul.f32.gmra.mxu0 %v691
        %v828 = vpop.f32.mrf.mxu0
        %v829 = vadd.f32 %v749, %v828
        %830 = vmatmul.f32.gmra.mxu0 %v693
        %v831 = vpop.f32.mrf.mxu0
        %v832 = vadd.f32 %v749, %v831
        %833 = vmatmul.f32.gmra.mxu0 %v695
        %v834 = vpop.f32.mrf.mxu0
        %v835 = vadd.f32 %v749, %v834
        %836 = vmatmul.f32.gmra.mxu0 %v697
        %v837 = vpop.f32.mrf.mxu0
        %v838 = vadd.f32 %v749, %v837
        %839 = vmatmul.f32.gmra.mxu0 %v699
        %v840 = vpop.f32.mrf.mxu0
        %v841 = vadd.f32 %v749, %v840
        %842 = vmatmul.f32.gmra.mxu0 %v701
        %v843 = vpop.f32.mrf.mxu0
        %v844 = vadd.f32 %v749, %v843
        %845 = vmatmul.f32.gmra.mxu0 %v703
        %v846 = vpop.f32.mrf.mxu0
        %v847 = vadd.f32 %v749, %v846
        %848 = vmatmul.f32.gmra.mxu0 %v705
        %v849 = vpop.f32.mrf.mxu0
        %v850 = vadd.f32 %v749, %v849
        %851 = vmatmul.f32.gmra.mxu0 %v707
        %v852 = vpop.f32.mrf.mxu0
        %v853 = vadd.f32 %v749, %v852
        %854 = vmatmul.f32.gmra.mxu0 %v709
        %v855 = vpop.f32.mrf.mxu0
        %v856 = vadd.f32 %v749, %v855
        %857 = vmatmul.f32.gmra.mxu0 %v711
        %v858 = vpop.f32.mrf.mxu0
        %v859 = vadd.f32 %v749, %v858
        %860 = vmatmul.f32.gmra.mxu0 %v713
        %v861 = vpop.f32.mrf.mxu0
        %v862 = vadd.f32 %v749, %v861
        %863 = vdwg.mxu0
        %864 = vmatpush.msra.mxu0 %v746
        %865 = vmatpush.msra.mxu0 %v745
        %866 = vmatpush.msra.mxu0 %v744
        %867 = vmatpush.msra.mxu0 %v743
        %868 = vmatpush.msra.mxu0 %v742
        %869 = vmatpush.msra.mxu0 %v741
        %870 = vmatpush.msra.mxu0 %v740
        %871 = vmatpush.msra.mxu0 %v739
        %872 = vmatpush.msra.mxu0 %v738
        %873 = vmatpush.msra.mxu0 %v737
        %874 = vmatpush.msra.mxu0 %v736
        %875 = vmatpush.msra.mxu0 %v735
        %876 = vmatpush.msra.mxu0 %v734
        %877 = vmatpush.msra.mxu0 %v733
        %878 = vmatpush.msra.mxu0 %v732
        %879 = vmatpush.msra.mxu0 %v731
        %880 = vmatmul.f32.gmra.mxu0 %v652
        %v881 = vpop.f32.mrf.mxu0
        %v882 = vadd.f32 %v769, %v881
        %883 = vmatmul.f32.gmra.mxu0 %v654
        %v884 = vpop.f32.mrf.mxu0
        %v885 = vadd.f32 %v772, %v884
        %886 = vmatmul.f32.gmra.mxu0 %v656
        %v887 = vpop.f32.mrf.mxu0
        %v888 = vadd.f32 %v775, %v887
        %889 = vmatmul.f32.gmra.mxu0 %v658
        %v890 = vpop.f32.mrf.mxu0
        %v891 = vadd.f32 %v778, %v890
        %892 = vmatmul.f32.gmra.mxu0 %v660
        %v893 = vpop.f32.mrf.mxu0
        %v894 = vadd.f32 %v781, %v893
        %895 = vmatmul.f32.gmra.mxu0 %v662
        %v896 = vpop.f32.mrf.mxu0
        %v897 = vadd.f32 %v784, %v896
        %898 = vmatmul.f32.gmra.mxu0 %v664
        %v899 = vpop.f32.mrf.mxu0
        %v900 = vadd.f32 %v787, %v899
        %901 = vmatmul.f32.gmra.mxu0 %v666
        %v902 = vpop.f32.mrf.mxu0
        %v903 = vadd.f32 %v790, %v902
        %904 = vmatmul.f32.gmra.mxu0 %v668
        %v905 = vpop.f32.mrf.mxu0
        %v906 = vadd.f32 %v793, %v905
        %907 = vmatmul.f32.gmra.mxu0 %v670
        %v908 = vpop.f32.mrf.mxu0
        %v909 = vadd.f32 %v796, %v908
        %910 = vmatmul.f32.gmra.mxu0 %v672
        %v911 = vpop.f32.mrf.mxu0
        %v912 = vadd.f32 %v799, %v911
        %913 = vmatmul.f32.gmra.mxu0 %v674
        %v914 = vpop.f32.mrf.mxu0
        %v915 = vadd.f32 %v802, %v914
        %916 = vmatmul.f32.gmra.mxu0 %v676
        %v917 = vpop.f32.mrf.mxu0
        %v918 = vadd.f32 %v805, %v917
        %919 = vmatmul.f32.gmra.mxu0 %v678
        %v920 = vpop.f32.mrf.mxu0
        %v921 = vadd.f32 %v808, %v920
        %922 = vmatmul.f32.gmra.mxu0 %v680
        %v923 = vpop.f32.mrf.mxu0
        %v924 = vadd.f32 %v811, %v923
        %925 = vmatmul.f32.gmra.mxu0 %v682
        %v926 = vpop.f32.mrf.mxu0
        %v927 = vadd.f32 %v814, %v926
        %928 = vmatmul.f32.gmra.mxu0 %v684
        %v929 = vpop.f32.mrf.mxu0
        %v930 = vadd.f32 %v817, %v929
        %931 = vmatmul.f32.gmra.mxu0 %v686
        %v932 = vpop.f32.mrf.mxu0
        %v933 = vadd.f32 %v820, %v932
        %934 = vmatmul.f32.gmra.mxu0 %v688
        %v935 = vpop.f32.mrf.mxu0
        %v936 = vadd.f32 %v823, %v935
        %937 = vmatmul.f32.gmra.mxu0 %v690
        %v938 = vpop.f32.mrf.mxu0
        %v939 = vadd.f32 %v826, %v938
        %940 = vmatmul.f32.gmra.mxu0 %v692
        %v941 = vpop.f32.mrf.mxu0
        %v942 = vadd.f32 %v829, %v941
        %943 = vmatmul.f32.gmra.mxu0 %v694
        %v944 = vpop.f32.mrf.mxu0
        %v945 = vadd.f32 %v832, %v944
        %946 = vmatmul.f32.gmra.mxu0 %v696
        %v947 = vpop.f32.mrf.mxu0
        %v948 = vadd.f32 %v835, %v947
        %949 = vmatmul.f32.gmra.mxu0 %v698
        %v950 = vpop.f32.mrf.mxu0
        %v951 = vadd.f32 %v838, %v950
        %952 = vmatmul.f32.gmra.mxu0 %v700
        %v953 = vpop.f32.mrf.mxu0
        %v954 = vadd.f32 %v841, %v953
        %955 = vmatmul.f32.gmra.mxu0 %v702
        %v956 = vpop.f32.mrf.mxu0
        %v957 = vadd.f32 %v844, %v956
        %958 = vmatmul.f32.gmra.mxu0 %v704
        %v959 = vpop.f32.mrf.mxu0
        %v960 = vadd.f32 %v847, %v959
        %961 = vmatmul.f32.gmra.mxu0 %v706
        %v962 = vpop.f32.mrf.mxu0
        %v963 = vadd.f32 %v850, %v962
        %964 = vmatmul.f32.gmra.mxu0 %v708
        %v965 = vpop.f32.mrf.mxu0
        %v966 = vadd.f32 %v853, %v965
        %967 = vmatmul.f32.gmra.mxu0 %v710
        %v968 = vpop.f32.mrf.mxu0
        %v969 = vadd.f32 %v856, %v968
        %970 = vmatmul.f32.gmra.mxu0 %v712
        %v971 = vpop.f32.mrf.mxu0
        %v972 = vadd.f32 %v859, %v971
        %973 = vmatmul.f32.gmra.mxu0 %v714
        %v974 = vpop.f32.mrf.mxu0
        %v975 = vadd.f32 %v862, %v974
        %976 = vdwg.mxu0
        %v977 = vmax.f32 %v882, 0.0
        %v978 = vmax.f32 %v885, 0.0
        %v979 = vmax.f32 %v888, 0.0
        %v980 = vmax.f32 %v891, 0.0
        %v981 = vmax.f32 %v894, 0.0
        %v982 = vmax.f32 %v897, 0.0
        %v983 = vmax.f32 %v900, 0.0
        %v984 = vmax.f32 %v903, 0.0
        %v985 = vmax.f32 %v906, 0.0
        %v986 = vmax.f32 %v909, 0.0
        %v987 = vmax.f32 %v912, 0.0
        %v988 = vmax.f32 %v915, 0.0
        %v989 = vmax.f32 %v918, 0.0
        %v990 = vmax.f32 %v921, 0.0
        %v991 = vmax.f32 %v924, 0.0
        %v992 = vmax.f32 %v927, 0.0
        %v993 = vmax.f32 %v930, 0.0
        %v994 = vmax.f32 %v933, 0.0
        %v995 = vmax.f32 %v936, 0.0
        %v996 = vmax.f32 %v939, 0.0
        %v997 = vmax.f32 %v942, 0.0
        %v998 = vmax.f32 %v945, 0.0
        %v999 = vmax.f32 %v948, 0.0
        %v1000 = vmax.f32 %v951, 0.0
        %v1001 = vmax.f32 %v954, 0.0
        %v1002 = vmax.f32 %v957, 0.0
        %v1003 = vmax.f32 %v960, 0.0
        %v1004 = vmax.f32 %v963, 0.0
        %v1005 = vmax.f32 %v966, 0.0
        %v1006 = vmax.f32 %v969, 0.0
        %v1007 = vmax.f32 %v972, 0.0
        %v1008 = vmax.f32 %v975, 0.0
        %v1009 = vld [vmem:[%s5] sm:$0x1]
        %v1010 = vld [vmem:[#allocation2] sm:$0x1]
        %1012 = vset.pattern.permute.xlu0 0
        %1013 = vperm.xlu0 %1012, %v1010
        %v1014 = vpop.permute.xlu0 %1013
        %v1016 = vperm.slane %v1014, 0
        %1017 = vmatpush.xpose.msra.mxu0 %v992
        %1018 = vmatpush.xpose.msra.mxu0 %v991
        %1019 = vmatpush.xpose.msra.mxu0 %v990
        %1020 = vmatpush.xpose.msra.mxu0 %v989
        %1021 = vmatpush.xpose.msra.mxu0 %v988
        %1022 = vmatpush.xpose.msra.mxu0 %v987
        %1023 = vmatpush.xpose.msra.mxu0 %v986
        %1024 = vmatpush.xpose.msra.mxu0 %v985
        %1025 = vmatpush.xpose.msra.mxu0 %v984
        %1026 = vmatpush.xpose.msra.mxu0 %v983
        %1027 = vmatpush.xpose.msra.mxu0 %v982
        %1028 = vmatpush.xpose.msra.mxu0 %v981
        %1029 = vmatpush.xpose.msra.mxu0 %v980
        %1030 = vmatpush.xpose.msra.mxu0 %v979
        %1031 = vmatpush.xpose.msra.mxu0 %v978
        %1032 = vmatpush.xpose.msra.mxu0 %v977
        %1033 = vmatmul.f32.gmra.mxu0 %v1009
        %v1034 = vpop.f32.mrf.mxu0
        %v1035 = vadd.f32 %v1016, %v1034
        %1036 = vdwg.mxu0
        %1037 = vmatpush.xpose.msra.mxu0 %v1008
        %1038 = vmatpush.xpose.msra.mxu0 %v1007
        %1039 = vmatpush.xpose.msra.mxu0 %v1006
        %1040 = vmatpush.xpose.msra.mxu0 %v1005
        %1041 = vmatpush.xpose.msra.mxu0 %v1004
        %1042 = vmatpush.xpose.msra.mxu0 %v1003
        %1043 = vmatpush.xpose.msra.mxu0 %v1002
        %1044 = vmatpush.xpose.msra.mxu0 %v1001
        %1045 = vmatpush.xpose.msra.mxu0 %v1000
        %1046 = vmatpush.xpose.msra.mxu0 %v999
        %1047 = vmatpush.xpose.msra.mxu0 %v998
        %1048 = vmatpush.xpose.msra.mxu0 %v997
        %1049 = vmatpush.xpose.msra.mxu0 %v996
        %1050 = vmatpush.xpose.msra.mxu0 %v995
        %1051 = vmatpush.xpose.msra.mxu0 %v994
        %1052 = vmatpush.xpose.msra.mxu0 %v993
        %1053 = vmatmul.f32.gmra.mxu0 %v1009
        %v1054 = vpop.f32.mrf.mxu0
        %v1055 = vadd.f32 %v1016, %v1054
        %1056 = vdwg.mxu0
        %v1059 = vrot.slane %v1055, 7
        %vm1060 = vcmask 1040384
        %v1061 = vsel %vm1060, %v1035, %v1059
        %v1063 = vlaneseq
        %vm1064 = vcmp.ge.s32.totalorder %v1063, 0
        %vm1065 = vcmp.lt.s32.totalorder %v1063, 256
        %vm1066 = vmand %vm1064, %vm1065
        %1067 = vst.msk [vmem:[%s274] sm:$0x3] %vm1066, %v1061
        %s1068 = sand.u32 %s183, 1
        %s1069 = scalar_lea.sflag [#allocation4], %s1068
        %s1070 = sand.u32 %s183, 1
        %s1071 = smul.addr %s1070, 2
        %s1072 = scalar_lea.vmem [#allocation3], %s1071
        // Predicated region
        $region49: #{tpu_custom_call.1} parent=47 // pred_check
          %p1073 = pneg %p193
        $region50: #{tpu_custom_call.1} parent=47 // pred_check_branch
          %1075 = sbr.rel (%p1073) target = $region52
        $region51: #{tpu_custom_call.1} parent=47 // pred_region
          %s1076 = smul.u32 2, %s23
          %1078 = vsyncadd %s1069, 0
          %s1079 = scalar_lea.hbm %s7, %s1076
          %s1081 = sshll.u32 %s1072, 4
          %s1082 = int_to_ptr.vmem [resolvable:$true] %s1081
          %s1083 = sshll.u32 %s1079, 4
          %s1084 = int_to_ptr.hbm [resolvable:$true] %s1083
          %1086 = dma.vmem_to_hbm [thread:$0]  %s1082, 32, %s1084, %s1069
        $region52: #{tpu_custom_call.1} parent=47 // pred_fallthru
          _
      $region48: #{tpu_custom_call.1} parent=5 // pred_fallthru
        _
      %p1087 = scmp.le.s32.totalorder 2, %s18
      // Predicated region
      $region53: #{tpu_custom_call.1} parent=5 // pred_check
        %p1088 = pneg %p1087
      $region54: #{tpu_custom_call.1} parent=5 // pred_check_branch
        %1090 = sbr.rel (%p1088) target = $region56
      $region55: #{tpu_custom_call.1} parent=5 // pred_region
        %s1091 = ssub.s32 %s18, 2
        // Predicated region
        $region57: #{tpu_custom_call.1} parent=55 // pred_check
          %p1092 = pneg %p199
        $region58: #{tpu_custom_call.1} parent=55 // pred_check_branch
          %1094 = sbr.rel (%p1092) target = $region60
        $region59: #{tpu_custom_call.1} parent=55 // pred_region
          %s1095 = sand.u32 %s184, 1
          %s1096 = scalar_lea.sflag [#allocation4], %s1095
          %s1097 = sand.u32 %s184, 1
          %s1098 = smul.addr %s1097, 2
          %s1099 = scalar_lea.vmem [#allocation3], %s1098
          %1101 = dma.done %s1096, 32
        $region60: #{tpu_custom_call.1} parent=55 // pred_fallthru
          _
      $region56: #{tpu_custom_call.1} parent=5 // pred_fallthru
        _
    $region6: #{tpu_custom_call.1} parent=1 // loop_footer
      %s22 = sadd.s32 1, %s18
    $region7: #{tpu_custom_call.1} parent=1 // loop_footer_branch
      %17 = sbr.rel target = $region3
    $region8: #{tpu_custom_call.1} parent=1 // loop_exit
      _
    %1102 = vsyncpa [#allocation4], 1
    %s1103 = scalar_lea.sflag [#allocation4], 1
    %1104 = vsyncpa %s1103, 1

</llo_original>
